<compile_context>
chip_gen: v6e
topology: v6e:2x2x1
jax: 0.10.0
libtpu: 0.0.40
codegen_flags: <defaults>
</compile_context>

<pallas_src>
import functools

import jax
import jax.numpy as jnp
from jax.experimental import pallas as pl
from jax.experimental.pallas import tpu as pltpu

LANES = 128
SUBLANES = 8
# (8192, 128) f32 tile = 4 MiB; 2 inputs x 2 pipeline buffers = 16 MiB VMEM.
MAX_BLOCK_ROWS = 8192


def _dice_kernel(x_ref, t_ref, out_ref, *, bps, n_blocks, block_rows,
                 valid_rows_last):
    s = pl.program_id(0)          # split axis ("parallel": may shard across TCs)
    i = pl.program_id(1)          # reduction step within a split ("arbitrary")
    g = s * bps + i               # global block index (may exceed n_blocks - 1)

    @pl.when(i == 0)
    def _init():
        out_ref[...] = jnp.zeros_like(out_ref)

    folds = block_rows // SUBLANES

    def _sigmoid(x):
        # One EUP tanh per vreg instead of exp + reciprocal (keeps v7x HBM-bound).
        return 0.5 * (jnp.tanh(0.5 * x) + 1.0)

    def _accumulate(p, t):
        # Fold (block_rows, 128) -> (8, 128) with pure VPU adds and accumulate
        # directly into the resident output block (same block index for all i).
        out_ref[0, 0] += jnp.sum((p * t).reshape(folds, SUBLANES, LANES), axis=0)
        out_ref[0, 1] += jnp.sum(p.reshape(folds, SUBLANES, LANES), axis=0)
        out_ref[0, 2] += jnp.sum(t.reshape(folds, SUBLANES, LANES), axis=0)

    last_is_partial = valid_rows_last < block_rows            # static Python bool
    n_full = n_blocks - 1 if last_is_partial else n_blocks    # static Python int

    @pl.when(g < n_full)
    def _full_block():
        _accumulate(_sigmoid(x_ref[...].astype(jnp.float32)),
                    t_ref[...].astype(jnp.float32))

    if last_is_partial:
        # Only the single, statically-known ragged block pays the mask cost;
        # the undefined tail of the VMEM buffer (possibly NaN/Inf) is zeroed
        # before any multiply/add so it cannot poison the sums.
        @pl.when(g == n_blocks - 1)
        def _partial_block():
            p = _sigmoid(x_ref[...].astype(jnp.float32))
            t = t_ref[...].astype(jnp.float32)
            row = jax.lax.broadcasted_iota(jnp.int32, (block_rows, LANES), 0)
            keep = row < valid_rows_last
            _accumulate(jnp.where(keep, p, 0.0), jnp.where(keep, t, 0.0))
    # Grid slots with g >= n_blocks (at most one redundant slot when the block
    # count does not split evenly) skip accumulation; their input index_map is
    # clamped so no DMA runs out of bounds.


def dice_loss(inputs, targets, smooth=1e-6):
    """Returns (loss, avg_pred); matches PyTorch DiceLoss.forward semantics."""
    total = int(inputs.size)
    x = inputs.reshape(-1)          # keep native dtype; cast to f32 in-kernel
    t = targets.reshape(-1)

    # Pad only to the next multiple of 128 (<= 127 elements) when the lane view
    # would otherwise be impossible.  Logits pad with -1e30 (sigmoid -> 0) and
    # targets with 0, so the tiny tail contributes nothing to any sum.
    pad = (-total) % LANES
    if pad:
        # TODO(synk): for huge lane-unaligned inputs this still materializes one
        # full copy; a manual-DMA (memory_space=pl.ANY) path would avoid it.
        x = jnp.pad(x, (0, pad), constant_values=-1e30)
        t = jnp.pad(t, (0, pad), constant_values=0)
    rows = (total + pad) // LANES
    x = x.reshape(rows, LANES)
    t = t.reshape(rows, LANES)

    # Block-row alignment: 8 for 32-bit inputs, 16/32 for 16-/8-bit inputs.
    min_item = min(jnp.dtype(x.dtype).itemsize, jnp.dtype(t.dtype).itemsize)
    row_align = SUBLANES * max(1, 4 // min_item)
    block_rows = min(MAX_BLOCK_ROWS, pl.cdiv(rows, row_align) * row_align)
    n_blocks = pl.cdiv(rows, block_rows)
    valid_rows_last = rows - (n_blocks - 1) * block_rows

    # Two splits so a 2-TensorCore chip can stream both halves; on 1-TC chips
    # the leading axis simply runs serially (harmless).
    n_splits = 2 if n_blocks >= 2 else 1
    bps = pl.cdiv(n_blocks, n_splits)          # blocks per split (rectangular grid)

    def in_map(s, i):
        # Clamp so the (at most one) redundant slot re-reads the last real block
        # instead of issuing an out-of-bounds DMA; the kernel skips its math.
        return (jnp.minimum(s * bps + i, n_blocks - 1), 0)

    kernel = functools.partial(
        _dice_kernel, bps=bps, n_blocks=n_blocks, block_rows=block_rows,
        valid_rows_last=valid_rows_last)

    out = pl.pallas_call(
        kernel,
        out_shape=jax.ShapeDtypeStruct((n_splits, 3, SUBLANES, LANES), jnp.float32),
        grid_spec=pltpu.PrefetchScalarGridSpec(
            num_scalar_prefetch=0,
            grid=(n_splits, bps),
            in_specs=[
                pl.BlockSpec((block_rows, LANES), in_map),
                pl.BlockSpec((block_rows, LANES), in_map),
            ],
            out_specs=pl.BlockSpec((1, 3, SUBLANES, LANES),
                                   lambda s, i: (s, 0, 0, 0)),
        ),
        compiler_params=pltpu.CompilerParams(
            dimension_semantics=("parallel", "arbitrary"),
            vmem_limit_bytes=32 * 1024 * 1024,
        ),
    )(x, t)

    # Tiny JAX epilogue: exact final reduction over 3 * n_splits * 1024 floats
    # plus the scalar dice math.
    sums = jnp.sum(out, axis=(0, 2, 3))        # (3,) = [intersection, sum p, sum t]
    inter, psum, tsum = sums[0], sums[1], sums[2]
    dice = (2.0 * inter + smooth) / (psum + tsum + smooth)
    loss = 1.0 - dice
    avg_pred = psum / jnp.float32(total)
    return loss, avg_pred


def dice_loss_ref(inputs, targets, smooth=1e-6):
    p = jax.nn.sigmoid(inputs.reshape(-1).astype(jnp.float32))
    t = targets.reshape(-1).astype(jnp.float32)
    inter = jnp.sum(p * t)
    dice = (2.0 * inter + smooth) / (jnp.sum(p) + jnp.sum(t) + smooth)
    return 1.0 - dice, jnp.sum(p) / p.size


if __name__ == "__main__":
    key = jax.random.PRNGKey(0)
    k1, k2 = jax.random.split(key)
    # NCHW like the PyTorch module: batch=2, channels=4, spatial=16x16.
    x = jax.random.normal(k1, (2, 4, 16, 16), dtype=jnp.float32)
    tgt = (jax.random.uniform(k2, (2, 4, 16, 16)) > 0.5).astype(jnp.float32)

    loss, avg = dice_loss(x, tgt)
    loss = jax.block_until_ready(loss)
    avg = jax.block_until_ready(avg)
    # Mirrors the print() inside the PyTorch forward (host-side here).
    print('Average output probability:', float(avg))

    ref_loss, ref_avg = dice_loss_ref(x, tgt)
    assert jnp.allclose(loss, ref_loss, atol=1e-5, rtol=1e-5), (loss, ref_loss)
    assert jnp.allclose(avg, ref_avg, atol=1e-5, rtol=1e-5), (avg, ref_avg)
    print("KERNEL_OK")
</pallas_src>

<mosaic_0001>
module attributes {stable_mosaic.version = 11 : i64} {
  func.func @_dice_kernel(%arg0: i32, %arg1: i32, %arg2: memref<16x128xf32, #tpu.memory_space<vmem>>, %arg3: memref<16x128xf32, #tpu.memory_space<vmem>>, %arg4: memref<1x3x8x128xf32, #tpu.memory_space<vmem>>) attributes {dimension_semantics = [#tpu.dimension_semantics<parallel>, #tpu.dimension_semantics<arbitrary>], iteration_bounds = array<i64: 1, 1>, scalar_prefetch = 0 : i64, scratch_operands = 0 : i64, tpu.core_type = #tpu.core_type<tc>, window_params = [{transform_indices = @transform_0, window_bounds = array<i64: 16, 128>}, {transform_indices = @transform_1, window_bounds = array<i64: 16, 128>}, {transform_indices = @transform_2, window_bounds = array<i64: 1, 3, 8, 128>}]} {
    %c1_i32 = arith.constant 1 : i32
    %0 = arith.muli %arg0, %c1_i32 : i32
    %1 = arith.addi %0, %arg1 : i32
    %c0_i32 = arith.constant 0 : i32
    %2 = arith.cmpi eq, %arg1, %c0_i32 : i32
    %3 = arith.extui %2 : i1 to i32
    %c0_i32_0 = arith.constant 0 : i32
    %4 = arith.cmpi ne, %3, %c0_i32_0 : i32
    scf.if %4 {
      %cst = arith.constant 0.000000e+00 : f32
      %8 = vector.broadcast %cst : f32 to vector<1x3x8x128xf32>
      %c0 = arith.constant 0 : index
      %c0_3 = arith.constant 0 : index
      %c0_4 = arith.constant 0 : index
      %c0_5 = arith.constant 0 : index
      %9 = vector.load %arg4[%c0, %c0_3, %c0_4, %c0_5] : memref<1x3x8x128xf32, #tpu.memory_space<vmem>>, vector<1x3x8x128xf32>
      tpu.vector_store %arg4[%c0, %c0_3, %c0_4, %c0_5], %8 {strides = array<i32>} : memref<1x3x8x128xf32, #tpu.memory_space<vmem>>, vector<1x3x8x128xf32>,
    } else {
    }
    %c1_i32_1 = arith.constant 1 : i32
    %5 = arith.cmpi slt, %1, %c1_i32_1 : i32
    %6 = arith.extui %5 : i1 to i32
    %c0_i32_2 = arith.constant 0 : i32
    %7 = arith.cmpi ne, %6, %c0_i32_2 : i32
    scf.if %7 {
      %c0 = arith.constant 0 : index
      %c0_3 = arith.constant 0 : index
      %8 = vector.load %arg2[%c0, %c0_3] : memref<16x128xf32, #tpu.memory_space<vmem>>, vector<16x128xf32>
      %cst = arith.constant 5.000000e-01 : f32
      %9 = vector.broadcast %cst : f32 to vector<16x128xf32>
      %10 = arith.mulf %9, %8 : vector<16x128xf32>
      %11 = math.tanh %10 : vector<16x128xf32>
      %cst_4 = arith.constant 1.000000e+00 : f32
      %12 = vector.broadcast %cst_4 : f32 to vector<16x128xf32>
      %13 = arith.addf %11, %12 : vector<16x128xf32>
      %cst_5 = arith.constant 5.000000e-01 : f32
      %14 = vector.broadcast %cst_5 : f32 to vector<16x128xf32>
      %15 = arith.mulf %14, %13 : vector<16x128xf32>
      %c0_6 = arith.constant 0 : index
      %c0_7 = arith.constant 0 : index
      %16 = vector.load %arg3[%c0_6, %c0_7] : memref<16x128xf32, #tpu.memory_space<vmem>>, vector<16x128xf32>
      %c0_8 = arith.constant 0 : index
      %c0_9 = arith.constant 0 : index
      %c0_10 = arith.constant 0 : index
      %c0_11 = arith.constant 0 : index
      %17 = vector.load %arg4[%c0_8, %c0_9, %c0_10, %c0_11] : memref<1x3x8x128xf32, #tpu.memory_space<vmem>>, vector<1x1x8x128xf32>
      %18 = vector.shape_cast %17 : vector<1x1x8x128xf32> to vector<8x128xf32>
      %19 = arith.mulf %15, %16 : vector<16x128xf32>
      %20 = vector.shape_cast %19 : vector<16x128xf32> to vector<2x8x128xf32>
      %cst_12 = arith.constant dense<0.000000e+00> : vector<8x128xf32>
      %21 = vector.multi_reduction <add>, %20, %cst_12 [0] : vector<2x8x128xf32> to vector<8x128xf32>
      %22 = arith.addf %18, %21 : vector<8x128xf32>
      %c0_13 = arith.constant 0 : index
      %c0_14 = arith.constant 0 : index
      %c0_15 = arith.constant 0 : index
      %c0_16 = arith.constant 0 : index
      %23 = vector.load %arg4[%c0_13, %c0_14, %c0_15, %c0_16] : memref<1x3x8x128xf32, #tpu.memory_space<vmem>>, vector<1x1x8x128xf32>
      %24 = vector.shape_cast %23 : vector<1x1x8x128xf32> to vector<8x128xf32>
      %25 = vector.shape_cast %22 : vector<8x128xf32> to vector<1x1x8x128xf32>
      tpu.vector_store %arg4[%c0_13, %c0_14, %c0_15, %c0_16], %25 {strides = array<i32>} : memref<1x3x8x128xf32, #tpu.memory_space<vmem>>, vector<1x1x8x128xf32>,
      %c0_17 = arith.constant 0 : index
      %c1 = arith.constant 1 : index
      %c0_18 = arith.constant 0 : index
      %c0_19 = arith.constant 0 : index
      %26 = vector.load %arg4[%c0_17, %c1, %c0_18, %c0_19] : memref<1x3x8x128xf32, #tpu.memory_space<vmem>>, vector<1x1x8x128xf32>
      %27 = vector.shape_cast %26 : vector<1x1x8x128xf32> to vector<8x128xf32>
      %28 = vector.shape_cast %15 : vector<16x128xf32> to vector<2x8x128xf32>
      %cst_20 = arith.constant dense<0.000000e+00> : vector<8x128xf32>
      %29 = vector.multi_reduction <add>, %28, %cst_20 [0] : vector<2x8x128xf32> to vector<8x128xf32>
      %30 = arith.addf %27, %29 : vector<8x128xf32>
      %c0_21 = arith.constant 0 : index
      %c1_22 = arith.constant 1 : index
      %c0_23 = arith.constant 0 : index
      %c0_24 = arith.constant 0 : index
      %31 = vector.load %arg4[%c0_21, %c1_22, %c0_23, %c0_24] : memref<1x3x8x128xf32, #tpu.memory_space<vmem>>, vector<1x1x8x128xf32>
      %32 = vector.shape_cast %31 : vector<1x1x8x128xf32> to vector<8x128xf32>
      %33 = vector.shape_cast %30 : vector<8x128xf32> to vector<1x1x8x128xf32>
      tpu.vector_store %arg4[%c0_21, %c1_22, %c0_23, %c0_24], %33 {strides = array<i32>} : memref<1x3x8x128xf32, #tpu.memory_space<vmem>>, vector<1x1x8x128xf32>,
      %c0_25 = arith.constant 0 : index
      %c2 = arith.constant 2 : index
      %c0_26 = arith.constant 0 : index
      %c0_27 = arith.constant 0 : index
      %34 = vector.load %arg4[%c0_25, %c2, %c0_26, %c0_27] : memref<1x3x8x128xf32, #tpu.memory_space<vmem>>, vector<1x1x8x128xf32>
      %35 = vector.shape_cast %34 : vector<1x1x8x128xf32> to vector<8x128xf32>
      %36 = vector.shape_cast %16 : vector<16x128xf32> to vector<2x8x128xf32>
      %cst_28 = arith.constant dense<0.000000e+00> : vector<8x128xf32>
      %37 = vector.multi_reduction <add>, %36, %cst_28 [0] : vector<2x8x128xf32> to vector<8x128xf32>
      %38 = arith.addf %35, %37 : vector<8x128xf32>
      %c0_29 = arith.constant 0 : index
      %c2_30 = arith.constant 2 : index
      %c0_31 = arith.constant 0 : index
      %c0_32 = arith.constant 0 : index
      %39 = vector.load %arg4[%c0_29, %c2_30, %c0_31, %c0_32] : memref<1x3x8x128xf32, #tpu.memory_space<vmem>>, vector<1x1x8x128xf32>
      %40 = vector.shape_cast %39 : vector<1x1x8x128xf32> to vector<8x128xf32>
      %41 = vector.shape_cast %38 : vector<8x128xf32> to vector<1x1x8x128xf32>
      tpu.vector_store %arg4[%c0_29, %c2_30, %c0_31, %c0_32], %41 {strides = array<i32>} : memref<1x3x8x128xf32, #tpu.memory_space<vmem>>, vector<1x1x8x128xf32>,
    } else {
    }
    return
  }
  func.func @transform_0(%arg0: i32, %arg1: i32) -> (i32, i32) {
    %c1_i32 = arith.constant 1 : i32
    %0 = arith.muli %arg0, %c1_i32 : i32
    %1 = arith.addi %0, %arg1 : i32
    %c0_i32 = arith.constant 0 : i32
    %2 = arith.minsi %1, %c0_i32 : i32
    %c0_i32_0 = arith.constant 0 : i32
    %c0_i32_1 = arith.constant 0 : i32
    return %2, %c0_i32_0 : i32, i32
  }
  func.func @transform_1(%arg0: i32, %arg1: i32) -> (i32, i32) {
    %c1_i32 = arith.constant 1 : i32
    %0 = arith.muli %arg0, %c1_i32 : i32
    %1 = arith.addi %0, %arg1 : i32
    %c0_i32 = arith.constant 0 : i32
    %2 = arith.minsi %1, %c0_i32 : i32
    %c0_i32_0 = arith.constant 0 : i32
    %c0_i32_1 = arith.constant 0 : i32
    return %2, %c0_i32_0 : i32, i32
  }
  func.func @transform_2(%arg0: i32, %arg1: i32) -> (i32, i32, i32, i32) {
    %c0_i32 = arith.constant 0 : i32
    %c0_i32_0 = arith.constant 0 : i32
    %c0_i32_1 = arith.constant 0 : i32
    %c0_i32_2 = arith.constant 0 : i32
    return %arg0, %c0_i32, %c0_i32_0, %c0_i32_1 : i32, i32, i32, i32
  }
}

</mosaic_0001>

<llo_original>
// kernel: tpu_custom_call.1
$region0: #{tpu_custom_call.1}
  #allocation0 [shape = 'u32[]', space=smem, size = 0x4, offset = 0x4, fixed_abs, tag = 'smem constant byte address 0x4 - core index']
  #allocation1 [shape = 'u32[144,128]{1,0:T(1,128)}', space=vmem, size = 0x12000, scoped, tag = 'internal scratch']
  %s0 = inlined_call_operand.hbm [shape: f32[16,128], index: 0, kind: input, shape index: {}]
  %s1 = inlined_call_operand.hbm [shape: f32[16,128], index: 1, kind: input, shape index: {}]
  %s2 = inlined_call_operand.hbm [shape: f32[1,3,8,128], index: 2, kind: output, shape index: {}]
  %s3 = sld [smem:[#allocation0]]
  $region34: #{tpu_custom_call.1} parent=0
    _
  %s5 = ssub.s32 1, %s3
  %s6 = scalar_select 0, %s5, %s3
  $region1: #{tpu_custom_call.1} parent=0
    #allocation2 [shape = 'u8[8192]{0}', space=vmem, size = 0x2000, scoped, tag = 'input window, operand 0, single buffered']
    #allocation3 [shape = 's32[1]{0}', space=sflag, size = 0x4, scoped, tag = 'scoped memory for tpu_custom_call.1']
    #allocation4 [shape = 's32[1]{0}', space=sflag, size = 0x4, scoped, tag = 'scoped memory for tpu_custom_call.1']
    #allocation5 [shape = 'u8[8192]{0}', space=vmem, size = 0x2000, scoped, tag = 'input window, operand 1, single buffered']
    #allocation6 [shape = 's32[1]{0}', space=sflag, size = 0x4, scoped, tag = 'scoped memory for tpu_custom_call.1']
    #allocation7 [shape = 'u8[12288]{0}', space=vmem, size = 0x3000, scoped, tag = 'output window, operand 0, single buffered']
    %7 = vsyncpa [#allocation3], 0
    %8 = vsyncpa [#allocation6], 0
    %9 = vsyncpa [#allocation4], 0
    // Predicated region
    $region2: #{tpu_custom_call.1} parent=1 // pred_check
      _
    $region3: #{tpu_custom_call.1} parent=1 // pred_check_branch
      %11 = sbr.rel (0) target = $region5
    $region4: #{tpu_custom_call.1} parent=1 // pred_region
      %s12 = sadd.s32 0, 0
      %p13 = scmp.lt.s32.totalorder %s12, 0
      %s14 = scalar_select %p13, %s12, 0
      %s15 = smul.u32 2, %s14
      %s17 = ssub.s32 256, 256
      %18 = vsyncadd [#allocation3], %s17
      %s19 = smul.addr %s15, 128
      %s20 = scalar_lea.hbm %s0, %s19
      %s21 = sshll.u32 [#allocation2], 4
      %s22 = int_to_ptr.vmem [resolvable:$true] %s21
      %27 = dma.hbm_to_vmem [thread:$0]  %s20, 256, %s22, [#allocation3], 128, 128, 8
    $region5: #{tpu_custom_call.1} parent=1 // pred_fallthru
      _
    // Predicated region
    $region6: #{tpu_custom_call.1} parent=1 // pred_check
      _
    $region7: #{tpu_custom_call.1} parent=1 // pred_check_branch
      %29 = sbr.rel (0) target = $region9
    $region8: #{tpu_custom_call.1} parent=1 // pred_region
      %s30 = sadd.s32 0, 0
      %p31 = scmp.lt.s32.totalorder %s30, 0
      %s32 = scalar_select %p31, %s30, 0
      %s33 = smul.u32 2, %s32
      %s35 = ssub.s32 256, 256
      %36 = vsyncadd [#allocation6], %s35
      %s37 = smul.addr %s33, 128
      %s38 = scalar_lea.hbm %s1, %s37
      %s39 = sshll.u32 [#allocation5], 4
      %s40 = int_to_ptr.vmem [resolvable:$true] %s39
      %45 = dma.hbm_to_vmem [thread:$0]  %s38, 256, %s40, [#allocation6], 128, 128, 8
    $region9: #{tpu_custom_call.1} parent=1 // pred_fallthru
      _
    // Predicated region
    $region10: #{tpu_custom_call.1} parent=1 // pred_check
      _
    $region11: #{tpu_custom_call.1} parent=1 // pred_check_branch
      %47 = sbr.rel (0) target = $region13
    $region12: #{tpu_custom_call.1} parent=1 // pred_region
      %48 = dma.done [#allocation3], 256
    $region13: #{tpu_custom_call.1} parent=1 // pred_fallthru
      _
    // Predicated region
    $region14: #{tpu_custom_call.1} parent=1 // pred_check
      _
    $region15: #{tpu_custom_call.1} parent=1 // pred_check_branch
      %50 = sbr.rel (0) target = $region17
    $region16: #{tpu_custom_call.1} parent=1 // pred_region
      %51 = dma.done [#allocation6], 256
    $region17: #{tpu_custom_call.1} parent=1 // pred_fallthru
      _
    %s52 = sadd.s32 0, 0
    %p53 = scmp.lt.s32.totalorder %s52, 0
    %s54 = scalar_select %p53, %s52, 0
    %s55 = smul.u32 2, %s54
    %s56 = sadd.s32 0, 0
    %p57 = scmp.lt.s32.totalorder %s56, 0
    %s58 = scalar_select %p57, %s56, 0
    %s59 = smul.u32 2, %s58
    %s60 = sadd.s32 0, 0
    %p61 = scmp.eq.s32.totalorder 0, 0
    // Predicated region
    $region18: #{tpu_custom_call.1} parent=1 // pred_check
      %p62 = pneg %p61
    $region19: #{tpu_custom_call.1} parent=1 // pred_check_branch
      %64 = sbr.rel (%p62) target = $region21
    $region20: #{tpu_custom_call.1} parent=1 // pred_region
      %65 = vst [vmem:[#allocation7] sm:$0xff] 0.0
      %66 = vst [vmem:[#allocation7 + $0x8] sm:$0xff] 0.0
      %67 = vst [vmem:[#allocation7 + $0x10] sm:$0xff] 0.0
    $region21: #{tpu_custom_call.1} parent=1 // pred_fallthru
      _
    %p68 = scmp.lt.s32.totalorder %s60, 1
    // Predicated region
    $region22: #{tpu_custom_call.1} parent=1 // pred_check
      %p69 = pneg %p68
    $region23: #{tpu_custom_call.1} parent=1 // pred_check_branch
      %71 = sbr.rel (%p69) target = $region25
    $region24: #{tpu_custom_call.1} parent=1 // pred_region
      %v72 = vld [vmem:[#allocation2] sm:$0xff]
      %v73 = vld [vmem:[#allocation2 + $0x8] sm:$0xff]
      %v74 = vmul.f32 %v72, 0.5
      %v75 = vmul.f32 %v73, 0.5
      %v76 = vtanh.pop %v74
      %v77 = vtanh.pop %v75
      %v78 = vadd.f32 %v76, 1.0
      %v79 = vadd.f32 %v77, 1.0
      %v80 = vmul.f32 %v78, 0.5
      %v81 = vmul.f32 %v79, 0.5
      %v82 = vld [vmem:[#allocation5] sm:$0xff]
      %v83 = vld [vmem:[#allocation5 + $0x8] sm:$0xff]
      %v84 = vld [vmem:[#allocation7] sm:$0xff]
      %v85 = vmul.f32 %v80, %v82
      %v86 = vmul.f32 %v81, %v83
      %v87 = vadd.f32 %v85, %v86
      %v88 = vadd.f32 %v84, %v87
      %89 = vst [vmem:[#allocation7] sm:$0xff] %v88
      %s90 = scalar_lea.vmem [#allocation7], 8
      %v91 = vld [vmem:[%s90] sm:$0xff]
      %v92 = vadd.f32 %v80, %v81
      %v93 = vadd.f32 %v91, %v92
      %94 = vst [vmem:[%s90] sm:$0xff] %v93
      %s95 = scalar_lea.vmem [#allocation7], 16
      %v96 = vld [vmem:[%s95] sm:$0xff]
      %v97 = vadd.f32 %v82, %v83
      %v98 = vadd.f32 %v96, %v97
      %99 = vst [vmem:[%s95] sm:$0xff] %v98
    $region25: #{tpu_custom_call.1} parent=1 // pred_fallthru
      _
    // Predicated region
    $region26: #{tpu_custom_call.1} parent=1 // pred_check
      _
    $region27: #{tpu_custom_call.1} parent=1 // pred_check_branch
      %101 = sbr.rel (0) target = $region29
    $region28: #{tpu_custom_call.1} parent=1 // pred_region
      %s103 = ssub.s32 384, 384
      %104 = vsyncadd [#allocation4], %s103
      %s105 = sshll.u32 [#allocation7], 4
      %s106 = int_to_ptr.vmem [resolvable:$true] %s105
      %111 = dma.vmem_to_hbm [thread:$0]  %s106, 384, %s2, [#allocation4], 128, 128, 8
    $region29: #{tpu_custom_call.1} parent=1 // pred_fallthru
      _
    // Predicated region
    $region30: #{tpu_custom_call.1} parent=1 // pred_check
      _
    $region31: #{tpu_custom_call.1} parent=1 // pred_check_branch
      %113 = sbr.rel (0) target = $region33
    $region32: #{tpu_custom_call.1} parent=1 // pred_region
      %114 = dma.done [#allocation4], 384
    $region33: #{tpu_custom_call.1} parent=1 // pred_fallthru
      _
    %115 = vsyncpa [#allocation3], 1
    %116 = vsyncpa [#allocation6], 1
    %117 = vsyncpa [#allocation4], 1

</llo_original>
